<compile_context>
chip_gen: v7x
topology: tpu7x:2x2x1
jax: 0.10.0
libtpu: 0.0.40
codegen_flags: <defaults>
</compile_context>

<pallas_src>
from functools import partial

import jax
import jax.numpy as jnp
from jax.experimental import pallas as pl
from jax.experimental.pallas import tpu as pltpu


HID1 = 300   # first-stage hidden size (fixed by the module)
HID2 = 128   # combined-layer hidden size (fixed by the module)
LANE = 128


def _round_up(n, m):
    return ((n + m - 1) // m) * m


def _mlp_kernel(*refs, use_input2):
    """Fused SimpleMLP forward: all Linears + ReLUs in a single kernel body."""
    if use_input2:
        (x1_ref, x2_ref, w1_ref, b1_ref, w2_ref, b2_ref,
         wc1_ref, wc2_ref, bc_ref, wo_ref, bo_ref, out_ref) = refs
    else:
        (x1_ref, w1_ref, b1_ref, wc1_ref, bc_ref, wo_ref, bo_ref, out_ref) = refs

    # input1_layer1: Linear + ReLU (nn.Dropout(p=0.25) is identity in eval mode)
    # TODO(synk): training-mode stochastic dropout (pltpu.prng_*) not implemented.
    h1 = jnp.dot(x1_ref[...], w1_ref[...], preferred_element_type=jnp.float32)
    h1 = jnp.maximum(h1 + b1_ref[...], 0.0)

    # combined_layer1 applied to cat([h1, h2], -1) WITHOUT materializing the concat:
    #   cat([h1, h2]) @ Wc  ==  h1 @ Wc[:300] + h2 @ Wc[300:]
    c = jnp.dot(h1, wc1_ref[...], preferred_element_type=jnp.float32)
    if use_input2:
        h2 = jnp.dot(x2_ref[...], w2_ref[...], preferred_element_type=jnp.float32)
        h2 = jnp.maximum(h2 + b2_ref[...], 0.0)
        c = c + jnp.dot(h2, wc2_ref[...], preferred_element_type=jnp.float32)
    c = jnp.maximum(c + bc_ref[...], 0.0)

    # out_layer: Linear (weights zero-padded to a lane-dense 128-wide slab)
    logits = jnp.dot(c, wo_ref[...], preferred_element_type=jnp.float32) + bo_ref[...]
    out_ref[...] = logits.astype(out_ref.dtype)


def simple_mlp_pallas(params, input1, input2=None):
    use_input2 = input2 is not None
    assert use_input2 == params["use_input2"]
    B = input1.shape[0]
    out_pad = params["wo_pad"].shape[1]

    if use_input2:
        args = (input1, input2,
                params["w1"], params["b1"], params["w2"], params["b2"],
                params["wc1"], params["wc2"], params["bc"],
                params["wo_pad"], params["bo_pad"])
    else:
        args = (input1,
                params["w1"], params["b1"],
                params["wc1"], params["bc"],
                params["wo_pad"], params["bo_pad"])

    # Full-array blocks (block_shape == array shape), single grid step.
    in_specs = [pl.BlockSpec(a.shape, lambda i, nd=a.ndim: (0,) * nd) for a in args]

    out_padded = pl.pallas_call(
        partial(_mlp_kernel, use_input2=use_input2),
        out_shape=jax.ShapeDtypeStruct((B, out_pad), jnp.float32),
        grid=(1,),
        in_specs=in_specs,
        out_specs=pl.BlockSpec((B, out_pad), lambda i: (0, 0)),
        compiler_params=pltpu.CompilerParams(dimension_semantics=("arbitrary",)),
    )(*args)
    return out_padded[:, : params["out_dim"]]


def simple_mlp_forward(params, input1, input2=None, targets=None):
    """Mirrors SimpleMLP.forward: returns {'logits': ..., ['loss': ...]}."""
    logits = simple_mlp_pallas(params, input1, input2)
    output = {"logits": logits}
    if targets is not None:
        # nn.CrossEntropyLoss(reduction='mean') on the logits (scalar glue in plain JAX).
        logp = jax.nn.log_softmax(logits, axis=-1)
        nll = -jnp.take_along_axis(logp, targets[:, None], axis=-1)[:, 0]
        output["loss"] = jnp.mean(nll)
    return output


def simple_mlp_reference(params, input1, input2=None):
    """Pure-JAX reference mirroring the PyTorch forward (eval mode)."""
    h1 = jnp.maximum(input1 @ params["w1"] + params["b1"], 0.0)
    c = h1 @ params["wc1"]
    if input2 is not None:
        h2 = jnp.maximum(input2 @ params["w2"] + params["b2"], 0.0)
        c = c + h2 @ params["wc2"]
    c = jnp.maximum(c + params["bc"], 0.0)
    out_dim = params["out_dim"]
    return c @ params["wo_pad"][:, :out_dim] + params["bo_pad"][:, :out_dim]


def init_params(key, input_dim1, out_dim, input_dim2=-1):
    """Deterministic parameter init; weights stored as (in, out) for x @ W matmul."""
    use_input2 = input_dim2 > 0
    ks = jax.random.split(key, 8)

    def lin(kw, kb, din, dout):
        w = jax.random.normal(kw, (din, dout), jnp.float32) / jnp.sqrt(din)
        b = 0.01 * jax.random.normal(kb, (1, dout), jnp.float32)
        return w, b

    params = {"use_input2": use_input2, "out_dim": out_dim}
    w1, b1 = lin(ks[0], ks[1], input_dim1, HID1)
    params.update(w1=w1, b1=b1)

    combined_dim = HID1
    if use_input2:
        w2, b2 = lin(ks[2], ks[3], input_dim2, HID1)
        params.update(w2=w2, b2=b2)
        combined_dim = 2 * HID1

    wc, bc = lin(ks[4], ks[5], combined_dim, HID2)
    params["wc1"] = wc[:HID1]
    if use_input2:
        params["wc2"] = wc[HID1:]
    params["bc"] = bc

    # out_layer, zero-padded along the output-channel (lane) axis to 128 for dense stores.
    out_pad = _round_up(out_dim, LANE)
    wo, bo = lin(ks[6], ks[7], HID2, out_dim)
    params["wo_pad"] = jnp.zeros((HID2, out_pad), jnp.float32).at[:, :out_dim].set(wo)
    params["bo_pad"] = jnp.zeros((1, out_pad), jnp.float32).at[:, :out_dim].set(bo)
    return params


if __name__ == "__main__":
    key = jax.random.PRNGKey(0)
    k_p1, k_p2, k_x1, k_x2, k_t = jax.random.split(key, 5)

    B, D1, D2, OUT = 2, 32, 16, 5
    input1 = jax.random.normal(k_x1, (B, D1), dtype=jnp.float32)
    input2 = jax.random.normal(k_x2, (B, D2), dtype=jnp.float32)
    targets = jax.random.randint(k_t, (B,), 0, OUT, dtype=jnp.int32)

    # Two-input configuration (input_dim2 > 0), with targets -> logits + loss.
    params2 = init_params(k_p1, D1, OUT, input_dim2=D2)
    out = simple_mlp_forward(params2, input1, input2, targets)
    logits = jax.block_until_ready(out["logits"])
    loss = jax.block_until_ready(out["loss"])
    ref = simple_mlp_reference(params2, input1, input2)
    assert logits.shape == (B, OUT), logits.shape
    assert jnp.allclose(logits, ref, atol=1e-5, rtol=1e-5), "two-input logits mismatch"
    assert bool(jnp.isfinite(loss)), loss

    # Single-input configuration (input_dim2 <= 0, input2 is None).
    params1 = init_params(k_p2, D1, OUT)
    out1 = simple_mlp_forward(params1, input1)
    logits1 = jax.block_until_ready(out1["logits"])
    ref1 = simple_mlp_reference(params1, input1)
    assert logits1.shape == (B, OUT), logits1.shape
    assert jnp.allclose(logits1, ref1, atol=1e-5, rtol=1e-5), "single-input logits mismatch"

    print("KERNEL_OK")
</pallas_src>

<mosaic_0001>
module attributes {stable_mosaic.version = 11 : i64} {
  func.func @_mlp_kernel(%arg0: i32, %arg1: memref<2x32xf32, #tpu.memory_space<vmem>>, %arg2: memref<2x16xf32, #tpu.memory_space<vmem>>, %arg3: memref<32x300xf32, #tpu.memory_space<vmem>>, %arg4: memref<1x300xf32, #tpu.memory_space<vmem>>, %arg5: memref<16x300xf32, #tpu.memory_space<vmem>>, %arg6: memref<1x300xf32, #tpu.memory_space<vmem>>, %arg7: memref<300x128xf32, #tpu.memory_space<vmem>>, %arg8: memref<300x128xf32, #tpu.memory_space<vmem>>, %arg9: memref<1x128xf32, #tpu.memory_space<vmem>>, %arg10: memref<128x128xf32, #tpu.memory_space<vmem>>, %arg11: memref<1x128xf32, #tpu.memory_space<vmem>>, %arg12: memref<2x128xf32, #tpu.memory_space<vmem>>) attributes {dimension_semantics = [#tpu.dimension_semantics<arbitrary>], iteration_bounds = array<i64: 1>, scalar_prefetch = 0 : i64, scratch_operands = 0 : i64, tpu.core_type = #tpu.core_type<tc>, window_params = [{pipeline_mode = #tpu.pipeline_mode<synchronous>, transform_indices = @transform_0, window_bounds = array<i64: 2, 32>}, {pipeline_mode = #tpu.pipeline_mode<synchronous>, transform_indices = @transform_1, window_bounds = array<i64: 2, 16>}, {pipeline_mode = #tpu.pipeline_mode<synchronous>, transform_indices = @transform_2, window_bounds = array<i64: 32, 300>}, {pipeline_mode = #tpu.pipeline_mode<synchronous>, transform_indices = @transform_3, window_bounds = array<i64: 1, 300>}, {pipeline_mode = #tpu.pipeline_mode<synchronous>, transform_indices = @transform_4, window_bounds = array<i64: 16, 300>}, {pipeline_mode = #tpu.pipeline_mode<synchronous>, transform_indices = @transform_5, window_bounds = array<i64: 1, 300>}, {pipeline_mode = #tpu.pipeline_mode<synchronous>, transform_indices = @transform_6, window_bounds = array<i64: 300, 128>}, {pipeline_mode = #tpu.pipeline_mode<synchronous>, transform_indices = @transform_7, window_bounds = array<i64: 300, 128>}, {pipeline_mode = #tpu.pipeline_mode<synchronous>, transform_indices = @transform_8, window_bounds = array<i64: 1, 128>}, {pipeline_mode = #tpu.pipeline_mode<synchronous>, transform_indices = @transform_9, window_bounds = array<i64: 128, 128>}, {pipeline_mode = #tpu.pipeline_mode<synchronous>, transform_indices = @transform_10, window_bounds = array<i64: 1, 128>}, {pipeline_mode = #tpu.pipeline_mode<synchronous>, transform_indices = @transform_11, window_bounds = array<i64: 2, 128>}]} {
    %c0 = arith.constant 0 : index
    %c0_0 = arith.constant 0 : index
    %0 = vector.load %arg1[%c0, %c0_0] : memref<2x32xf32, #tpu.memory_space<vmem>>, vector<2x32xf32>
    %c0_1 = arith.constant 0 : index
    %c0_2 = arith.constant 0 : index
    %1 = vector.load %arg3[%c0_1, %c0_2] : memref<32x300xf32, #tpu.memory_space<vmem>>, vector<32x300xf32>
    %cst = arith.constant dense<0.000000e+00> : vector<2x300xf32>
    %2 = tpu.matmul %0, %1, %cst {dimension_numbers = #tpu.dot_dimension_numbers<[1], [0], [0], [1], [0, 0, 1, 1], [], []>} : vector<2x32xf32>, vector<32x300xf32>, vector<2x300xf32> -> vector<2x300xf32>
    %c0_3 = arith.constant 0 : index
    %c0_4 = arith.constant 0 : index
    %3 = vector.load %arg4[%c0_3, %c0_4] : memref<1x300xf32, #tpu.memory_space<vmem>>, vector<1x300xf32>
    %4 = vector.broadcast %3 : vector<1x300xf32> to vector<2x300xf32>
    %5 = arith.addf %2, %4 : vector<2x300xf32>
    %cst_5 = arith.constant 0.000000e+00 : f32
    %6 = vector.broadcast %cst_5 : f32 to vector<2x300xf32>
    %7 = arith.maximumf %5, %6 : vector<2x300xf32>
    %c0_6 = arith.constant 0 : index
    %c0_7 = arith.constant 0 : index
    %8 = vector.load %arg7[%c0_6, %c0_7] : memref<300x128xf32, #tpu.memory_space<vmem>>, vector<300x128xf32>
    %cst_8 = arith.constant dense<0.000000e+00> : vector<2x128xf32>
    %9 = tpu.matmul %7, %8, %cst_8 {dimension_numbers = #tpu.dot_dimension_numbers<[1], [0], [0], [1], [0, 0, 1, 1], [], []>} : vector<2x300xf32>, vector<300x128xf32>, vector<2x128xf32> -> vector<2x128xf32>
    %c0_9 = arith.constant 0 : index
    %c0_10 = arith.constant 0 : index
    %10 = vector.load %arg2[%c0_9, %c0_10] : memref<2x16xf32, #tpu.memory_space<vmem>>, vector<2x16xf32>
    %c0_11 = arith.constant 0 : index
    %c0_12 = arith.constant 0 : index
    %11 = vector.load %arg5[%c0_11, %c0_12] : memref<16x300xf32, #tpu.memory_space<vmem>>, vector<16x300xf32>
    %cst_13 = arith.constant dense<0.000000e+00> : vector<2x300xf32>
    %12 = tpu.matmul %10, %11, %cst_13 {dimension_numbers = #tpu.dot_dimension_numbers<[1], [0], [0], [1], [0, 0, 1, 1], [], []>} : vector<2x16xf32>, vector<16x300xf32>, vector<2x300xf32> -> vector<2x300xf32>
    %c0_14 = arith.constant 0 : index
    %c0_15 = arith.constant 0 : index
    %13 = vector.load %arg6[%c0_14, %c0_15] : memref<1x300xf32, #tpu.memory_space<vmem>>, vector<1x300xf32>
    %14 = vector.broadcast %13 : vector<1x300xf32> to vector<2x300xf32>
    %15 = arith.addf %12, %14 : vector<2x300xf32>
    %cst_16 = arith.constant 0.000000e+00 : f32
    %16 = vector.broadcast %cst_16 : f32 to vector<2x300xf32>
    %17 = arith.maximumf %15, %16 : vector<2x300xf32>
    %c0_17 = arith.constant 0 : index
    %c0_18 = arith.constant 0 : index
    %18 = vector.load %arg8[%c0_17, %c0_18] : memref<300x128xf32, #tpu.memory_space<vmem>>, vector<300x128xf32>
    %cst_19 = arith.constant dense<0.000000e+00> : vector<2x128xf32>
    %19 = tpu.matmul %17, %18, %cst_19 {dimension_numbers = #tpu.dot_dimension_numbers<[1], [0], [0], [1], [0, 0, 1, 1], [], []>} : vector<2x300xf32>, vector<300x128xf32>, vector<2x128xf32> -> vector<2x128xf32>
    %20 = arith.addf %9, %19 : vector<2x128xf32>
    %c0_20 = arith.constant 0 : index
    %c0_21 = arith.constant 0 : index
    %21 = vector.load %arg9[%c0_20, %c0_21] : memref<1x128xf32, #tpu.memory_space<vmem>>, vector<1x128xf32>
    %22 = vector.broadcast %21 : vector<1x128xf32> to vector<2x128xf32>
    %23 = arith.addf %20, %22 : vector<2x128xf32>
    %cst_22 = arith.constant 0.000000e+00 : f32
    %24 = vector.broadcast %cst_22 : f32 to vector<2x128xf32>
    %25 = arith.maximumf %23, %24 : vector<2x128xf32>
    %c0_23 = arith.constant 0 : index
    %c0_24 = arith.constant 0 : index
    %26 = vector.load %arg10[%c0_23, %c0_24] : memref<128x128xf32, #tpu.memory_space<vmem>>, vector<128x128xf32>
    %cst_25 = arith.constant dense<0.000000e+00> : vector<2x128xf32>
    %27 = tpu.matmul %25, %26, %cst_25 {dimension_numbers = #tpu.dot_dimension_numbers<[1], [0], [0], [1], [0, 0, 1, 1], [], []>} : vector<2x128xf32>, vector<128x128xf32>, vector<2x128xf32> -> vector<2x128xf32>
    %c0_26 = arith.constant 0 : index
    %c0_27 = arith.constant 0 : index
    %28 = vector.load %arg11[%c0_26, %c0_27] : memref<1x128xf32, #tpu.memory_space<vmem>>, vector<1x128xf32>
    %29 = vector.broadcast %28 : vector<1x128xf32> to vector<2x128xf32>
    %30 = arith.addf %27, %29 : vector<2x128xf32>
    %c0_28 = arith.constant 0 : index
    %c0_29 = arith.constant 0 : index
    %31 = vector.load %arg12[%c0_28, %c0_29] : memref<2x128xf32, #tpu.memory_space<vmem>>, vector<2x128xf32>
    tpu.vector_store %arg12[%c0_28, %c0_29], %30 {strides = array<i32>} : memref<2x128xf32, #tpu.memory_space<vmem>>, vector<2x128xf32>,
    return
  }
  func.func @transform_0(%arg0: i32) -> (i32, i32) {
    %c0_i32 = arith.constant 0 : i32
    %c0_i32_0 = arith.constant 0 : i32
    %c0_i32_1 = arith.constant 0 : i32
    return %c0_i32, %c0_i32_0 : i32, i32
  }
  func.func @transform_1(%arg0: i32) -> (i32, i32) {
    %c0_i32 = arith.constant 0 : i32
    %c0_i32_0 = arith.constant 0 : i32
    %c0_i32_1 = arith.constant 0 : i32
    return %c0_i32, %c0_i32_0 : i32, i32
  }
  func.func @transform_2(%arg0: i32) -> (i32, i32) {
    %c0_i32 = arith.constant 0 : i32
    %c0_i32_0 = arith.constant 0 : i32
    %c0_i32_1 = arith.constant 0 : i32
    return %c0_i32, %c0_i32_0 : i32, i32
  }
  func.func @transform_3(%arg0: i32) -> (i32, i32) {
    %c0_i32 = arith.constant 0 : i32
    %c0_i32_0 = arith.constant 0 : i32
    %c0_i32_1 = arith.constant 0 : i32
    return %c0_i32, %c0_i32_0 : i32, i32
  }
  func.func @transform_4(%arg0: i32) -> (i32, i32) {
    %c0_i32 = arith.constant 0 : i32
    %c0_i32_0 = arith.constant 0 : i32
    %c0_i32_1 = arith.constant 0 : i32
    return %c0_i32, %c0_i32_0 : i32, i32
  }
  func.func @transform_5(%arg0: i32) -> (i32, i32) {
    %c0_i32 = arith.constant 0 : i32
    %c0_i32_0 = arith.constant 0 : i32
    %c0_i32_1 = arith.constant 0 : i32
    return %c0_i32, %c0_i32_0 : i32, i32
  }
  func.func @transform_6(%arg0: i32) -> (i32, i32) {
    %c0_i32 = arith.constant 0 : i32
    %c0_i32_0 = arith.constant 0 : i32
    %c0_i32_1 = arith.constant 0 : i32
    return %c0_i32, %c0_i32_0 : i32, i32
  }
  func.func @transform_7(%arg0: i32) -> (i32, i32) {
    %c0_i32 = arith.constant 0 : i32
    %c0_i32_0 = arith.constant 0 : i32
    %c0_i32_1 = arith.constant 0 : i32
    return %c0_i32, %c0_i32_0 : i32, i32
  }
  func.func @transform_8(%arg0: i32) -> (i32, i32) {
    %c0_i32 = arith.constant 0 : i32
    %c0_i32_0 = arith.constant 0 : i32
    %c0_i32_1 = arith.constant 0 : i32
    return %c0_i32, %c0_i32_0 : i32, i32
  }
  func.func @transform_9(%arg0: i32) -> (i32, i32) {
    %c0_i32 = arith.constant 0 : i32
    %c0_i32_0 = arith.constant 0 : i32
    %c0_i32_1 = arith.constant 0 : i32
    return %c0_i32, %c0_i32_0 : i32, i32
  }
  func.func @transform_10(%arg0: i32) -> (i32, i32) {
    %c0_i32 = arith.constant 0 : i32
    %c0_i32_0 = arith.constant 0 : i32
    %c0_i32_1 = arith.constant 0 : i32
    return %c0_i32, %c0_i32_0 : i32, i32
  }
  func.func @transform_11(%arg0: i32) -> (i32, i32) {
    %c0_i32 = arith.constant 0 : i32
    %c0_i32_0 = arith.constant 0 : i32
    %c0_i32_1 = arith.constant 0 : i32
    return %c0_i32, %c0_i32_0 : i32, i32
  }
}

</mosaic_0001>

<llo_original>
// kernel: tpu_custom_call.1
$region0: #{tpu_custom_call.1}
  #allocation0 [shape = 'u32[]', space=smem, size = 0x4, offset = 0x4, fixed_abs, tag = 'smem constant byte address 0x4 - core index']
  #allocation1 [shape = 'u32[144,128]{1,0:T(1,128)}', space=vmem, size = 0x12000, scoped, tag = 'internal scratch']
  %s0 = inlined_call_operand.hbm [shape: f32[2,32], index: 0, kind: input, shape index: {}]
  %s1 = inlined_call_operand.hbm [shape: f32[2,16], index: 1, kind: input, shape index: {}]
  %s2 = inlined_call_operand.hbm [shape: f32[32,300], index: 2, kind: input, shape index: {}]
  %s3 = inlined_call_operand.vmem [shape: f32[1,300], index: 3, kind: input, shape index: {}]
  %s4 = inlined_call_operand.hbm [shape: f32[16,300], index: 4, kind: input, shape index: {}]
  %s5 = inlined_call_operand.vmem [shape: f32[1,300], index: 5, kind: input, shape index: {}]
  %s6 = inlined_call_operand.hbm [shape: f32[300,128], index: 6, kind: input, shape index: {}]
  %s7 = inlined_call_operand.hbm [shape: f32[300,128], index: 7, kind: input, shape index: {}]
  %s8 = inlined_call_operand.vmem [shape: f32[1,128], index: 8, kind: input, shape index: {}]
  %s9 = inlined_call_operand.hbm [shape: f32[128,128], index: 9, kind: input, shape index: {}]
  %s10 = inlined_call_operand.vmem [shape: f32[1,128], index: 10, kind: input, shape index: {}]
  %s11 = inlined_call_operand.hbm [shape: f32[2,128], index: 11, kind: output, shape index: {}]
  %s12 = sld [smem:[#allocation0]]
  $region82: #{tpu_custom_call.1} parent=0
    _
  %s14 = ssub.s32 1, %s12
  %s15 = scalar_select 0, %s14, %s12
  $region1: #{tpu_custom_call.1} parent=0
    #allocation2 [shape = 'u8[1024]{0}', space=vmem, size = 0x400, scoped, tag = 'input window, operand 0, single buffered']
    #allocation3 [shape = 's32[1]{0}', space=sflag, size = 0x4, scoped, tag = 'scoped memory for tpu_custom_call.1']
    #allocation4 [shape = 's32[1]{0}', space=sflag, size = 0x4, scoped, tag = 'scoped memory for tpu_custom_call.1']
    #allocation5 [shape = 'u8[1024]{0}', space=vmem, size = 0x400, scoped, tag = 'input window, operand 1, single buffered']
    #allocation6 [shape = 's32[1]{0}', space=sflag, size = 0x4, scoped, tag = 'scoped memory for tpu_custom_call.1']
    #allocation7 [shape = 'u8[49152]{0}', space=vmem, size = 0xc000, scoped, tag = 'input window, operand 2, single buffered']
    #allocation8 [shape = 'u8[24576]{0}', space=vmem, size = 0x6000, scoped, tag = 'input window, operand 4, single buffered']
    #allocation9 [shape = 's32[1]{0}', space=sflag, size = 0x4, scoped, tag = 'scoped memory for tpu_custom_call.1']
    #allocation10 [shape = 'u8[155648]{0}', space=vmem, size = 0x26000, scoped, tag = 'input window, operand 6, single buffered']
    #allocation11 [shape = 'u8[155648]{0}', space=vmem, size = 0x26000, scoped, tag = 'input window, operand 7, single buffered']
    #allocation12 [shape = 's32[1]{0}', space=sflag, size = 0x4, scoped, tag = 'scoped memory for tpu_custom_call.1']
    #allocation13 [shape = 'u8[65536]{0}', space=vmem, size = 0x10000, scoped, tag = 'input window, operand 9, single buffered']
    #allocation14 [shape = 'u8[1024]{0}', space=vmem, size = 0x400, scoped, tag = 'output window, operand 0, single buffered']
    %16 = vsyncpa [#allocation3], 0
    %17 = vsyncpa [#allocation6], 0
    %18 = vsyncpa [#allocation9], 0
    %19 = vsyncpa [#allocation12], 0
    %20 = vsyncpa [#allocation4], 0
    // Predicated region
    $region2: #{tpu_custom_call.1} parent=1 // pred_check
      _
    $region3: #{tpu_custom_call.1} parent=1 // pred_check_branch
      %22 = sbr.rel (0) target = $region5
    $region4: #{tpu_custom_call.1} parent=1 // pred_region
      %s24 = ssub.s32 32, 32
      %25 = vsyncadd [#allocation3], %s24
      %s27 = sshll.u32 [#allocation2], 4
      %s28 = int_to_ptr.vmem [resolvable:$true] %s27
      %30 = dma.hbm_to_vmem [thread:$0]  %s0, 32, %s28, [#allocation3]
    $region5: #{tpu_custom_call.1} parent=1 // pred_fallthru
      _
    // Predicated region
    $region6: #{tpu_custom_call.1} parent=1 // pred_check
      _
    $region7: #{tpu_custom_call.1} parent=1 // pred_check_branch
      %32 = sbr.rel (0) target = $region9
    $region8: #{tpu_custom_call.1} parent=1 // pred_region
      %s34 = ssub.s32 32, 32
      %35 = vsyncadd [#allocation6], %s34
      %s37 = sshll.u32 [#allocation5], 4
      %s38 = int_to_ptr.vmem [resolvable:$true] %s37
      %40 = dma.hbm_to_vmem [thread:$0]  %s1, 32, %s38, [#allocation6]
    $region9: #{tpu_custom_call.1} parent=1 // pred_fallthru
      _
    // Predicated region
    $region10: #{tpu_custom_call.1} parent=1 // pred_check
      _
    $region11: #{tpu_custom_call.1} parent=1 // pred_check_branch
      %42 = sbr.rel (0) target = $region13
    $region12: #{tpu_custom_call.1} parent=1 // pred_region
      %s44 = ssub.s32 1536, 1536
      %45 = vsyncadd [#allocation6], %s44
      %s46 = sshll.u32 [#allocation7], 4
      %s47 = int_to_ptr.vmem [resolvable:$true] %s46
      %52 = dma.hbm_to_vmem [thread:$0]  %s2, 1536, %s47, [#allocation6], 384, 384, 24
    $region13: #{tpu_custom_call.1} parent=1 // pred_fallthru
      _
    // Predicated region
    $region14: #{tpu_custom_call.1} parent=1 // pred_check
      _
    $region15: #{tpu_custom_call.1} parent=1 // pred_check_branch
      %54 = sbr.rel (0) target = $region17
    $region16: #{tpu_custom_call.1} parent=1 // pred_region
      _
    $region17: #{tpu_custom_call.1} parent=1 // pred_fallthru
      _
    // Predicated region
    $region18: #{tpu_custom_call.1} parent=1 // pred_check
      _
    $region19: #{tpu_custom_call.1} parent=1 // pred_check_branch
      %56 = sbr.rel (0) target = $region21
    $region20: #{tpu_custom_call.1} parent=1 // pred_region
      %s58 = ssub.s32 768, 768
      %59 = vsyncadd [#allocation9], %s58
      %s60 = sshll.u32 [#allocation8], 4
      %s61 = int_to_ptr.vmem [resolvable:$true] %s60
      %66 = dma.hbm_to_vmem [thread:$0]  %s4, 768, %s61, [#allocation9], 384, 384, 24
    $region21: #{tpu_custom_call.1} parent=1 // pred_fallthru
      _
    // Predicated region
    $region22: #{tpu_custom_call.1} parent=1 // pred_check
      _
    $region23: #{tpu_custom_call.1} parent=1 // pred_check_branch
      %68 = sbr.rel (0) target = $region25
    $region24: #{tpu_custom_call.1} parent=1 // pred_region
      _
    $region25: #{tpu_custom_call.1} parent=1 // pred_fallthru
      _
    // Predicated region
    $region26: #{tpu_custom_call.1} parent=1 // pred_check
      _
    $region27: #{tpu_custom_call.1} parent=1 // pred_check_branch
      %70 = sbr.rel (0) target = $region29
    $region28: #{tpu_custom_call.1} parent=1 // pred_region
      %s72 = ssub.s32 4864, 4864
      %73 = vsyncadd [#allocation9], %s72
      %s74 = sshll.u32 [#allocation10], 4
      %s75 = int_to_ptr.vmem [resolvable:$true] %s74
      %80 = dma.hbm_to_vmem [thread:$0]  %s6, 4864, %s75, [#allocation9], 128, 128, 8
    $region29: #{tpu_custom_call.1} parent=1 // pred_fallthru
      _
    // Predicated region
    $region30: #{tpu_custom_call.1} parent=1 // pred_check
      _
    $region31: #{tpu_custom_call.1} parent=1 // pred_check_branch
      %82 = sbr.rel (0) target = $region33
    $region32: #{tpu_custom_call.1} parent=1 // pred_region
      %s84 = ssub.s32 4864, 4864
      %85 = vsyncadd [#allocation12], %s84
      %s86 = sshll.u32 [#allocation11], 4
      %s87 = int_to_ptr.vmem [resolvable:$true] %s86
      %92 = dma.hbm_to_vmem [thread:$0]  %s7, 4864, %s87, [#allocation12], 128, 128, 8
    $region33: #{tpu_custom_call.1} parent=1 // pred_fallthru
      _
    // Predicated region
    $region34: #{tpu_custom_call.1} parent=1 // pred_check
      _
    $region35: #{tpu_custom_call.1} parent=1 // pred_check_branch
      %94 = sbr.rel (0) target = $region37
    $region36: #{tpu_custom_call.1} parent=1 // pred_region
      _
    $region37: #{tpu_custom_call.1} parent=1 // pred_fallthru
      _
    // Predicated region
    $region38: #{tpu_custom_call.1} parent=1 // pred_check
      _
    $region39: #{tpu_custom_call.1} parent=1 // pred_check_branch
      %96 = sbr.rel (0) target = $region41
    $region40: #{tpu_custom_call.1} parent=1 // pred_region
      %s98 = ssub.s32 2048, 2048
      %99 = vsyncadd [#allocation12], %s98
      %s100 = sshll.u32 [#allocation13], 4
      %s101 = int_to_ptr.vmem [resolvable:$true] %s100
      %106 = dma.hbm_to_vmem [thread:$0]  %s9, 2048, %s101, [#allocation12], 128, 128, 8
    $region41: #{tpu_custom_call.1} parent=1 // pred_fallthru
      _
    // Predicated region
    $region42: #{tpu_custom_call.1} parent=1 // pred_check
      _
    $region43: #{tpu_custom_call.1} parent=1 // pred_check_branch
      %108 = sbr.rel (0) target = $region45
    $region44: #{tpu_custom_call.1} parent=1 // pred_region
      _
    $region45: #{tpu_custom_call.1} parent=1 // pred_fallthru
      _
    // Predicated region
    $region46: #{tpu_custom_call.1} parent=1 // pred_check
      _
    $region47: #{tpu_custom_call.1} parent=1 // pred_check_branch
      %110 = sbr.rel (0) target = $region49
    $region48: #{tpu_custom_call.1} parent=1 // pred_region
      %111 = dma.done [#allocation3], 32
    $region49: #{tpu_custom_call.1} parent=1 // pred_fallthru
      _
    // Predicated region
    $region50: #{tpu_custom_call.1} parent=1 // pred_check
      _
    $region51: #{tpu_custom_call.1} parent=1 // pred_check_branch
      %113 = sbr.rel (0) target = $region53
    $region52: #{tpu_custom_call.1} parent=1 // pred_region
      %114 = dma.done [#allocation6], 32
    $region53: #{tpu_custom_call.1} parent=1 // pred_fallthru
      _
    // Predicated region
    $region54: #{tpu_custom_call.1} parent=1 // pred_check
      _
    $region55: #{tpu_custom_call.1} parent=1 // pred_check_branch
      %116 = sbr.rel (0) target = $region57
    $region56: #{tpu_custom_call.1} parent=1 // pred_region
      %117 = dma.done [#allocation6], 1536
    $region57: #{tpu_custom_call.1} parent=1 // pred_fallthru
      _
    // Predicated region
    $region58: #{tpu_custom_call.1} parent=1 // pred_check
      _
    $region59: #{tpu_custom_call.1} parent=1 // pred_check_branch
      %119 = sbr.rel (0) target = $region61
    $region60: #{tpu_custom_call.1} parent=1 // pred_region
      %120 = dma.done [#allocation9], 768
    $region61: #{tpu_custom_call.1} parent=1 // pred_fallthru
      _
    // Predicated region
    $region62: #{tpu_custom_call.1} parent=1 // pred_check
      _
    $region63: #{tpu_custom_call.1} parent=1 // pred_check_branch
      %122 = sbr.rel (0) target = $region65
    $region64: #{tpu_custom_call.1} parent=1 // pred_region
      %123 = dma.done [#allocation9], 4864
    $region65: #{tpu_custom_call.1} parent=1 // pred_fallthru
      _
    // Predicated region
    $region66: #{tpu_custom_call.1} parent=1 // pred_check
      _
    $region67: #{tpu_custom_call.1} parent=1 // pred_check_branch
      %125 = sbr.rel (0) target = $region69
    $region68: #{tpu_custom_call.1} parent=1 // pred_region
      %126 = dma.done [#allocation12], 4864
    $region69: #{tpu_custom_call.1} parent=1 // pred_fallthru
      _
    // Predicated region
    $region70: #{tpu_custom_call.1} parent=1 // pred_check
      _
    $region71: #{tpu_custom_call.1} parent=1 // pred_check_branch
      %128 = sbr.rel (0) target = $region73
    $region72: #{tpu_custom_call.1} parent=1 // pred_region
      %129 = dma.done [#allocation12], 2048
    $region73: #{tpu_custom_call.1} parent=1 // pred_fallthru
      _
    %v130 = vld [vmem:[#allocation2] sm:$0x3]
    %v131 = vld [vmem:[#allocation7] sm:$0xff]
    %v132 = vld [vmem:[#allocation7 + $0x8] sm:$0xff]
    %v133 = vld [vmem:[#allocation7 + $0x10] sm:$0xff]
    %v134 = vld [vmem:[#allocation7 + $0x18] sm:$0xff]
    %v135 = vld [vmem:[#allocation7 + $0x20] sm:$0xff]
    %v136 = vld [vmem:[#allocation7 + $0x28] sm:$0xff]
    %v137 = vld [vmem:[#allocation7 + $0x30] sm:$0xff]
    %v138 = vld [vmem:[#allocation7 + $0x38] sm:$0xff]
    %v139 = vld [vmem:[#allocation7 + $0x40] sm:$0xff]
    %v140 = vld [vmem:[#allocation7 + $0x48] sm:$0xff]
    %v141 = vld [vmem:[#allocation7 + $0x50] sm:$0xff]
    %v142 = vld [vmem:[#allocation7 + $0x58] sm:$0xff]
    %v143 = vld [vmem:[%s3] sm:$0x7]
    %v145 = vlaneseq
    %v146 = vshrl.u32 %v145, 7
    %v147 = vsub.s32 0, %v146
    %v148 = vrot.slane %v143, %v147
    %v149 = vlaneseq
    %v150 = vshrl.u32 %v149, 7
    %v151 = vsub.s32 1, %v150
    %v152 = vrot.slane %v143, %v151
    %v153 = vlaneseq
    %v154 = vshrl.u32 %v153, 7
    %v155 = vsub.s32 2, %v154
    %v156 = vrot.slane %v143, %v155
    %vm160 = vcmask 261120
    %v162 = vsel %vm160, %v130, 0
    %164 = vmatprep.subr.mxu0 %v132
    %165 = vmatpush1.msra.mxu0 %v131
    %166 = vmatprep.subr.mxu0 %v135
    %167 = vmatpush1.msra.mxu0 %v134
    %168 = vmatprep.subr.mxu0 %v138
    %169 = vmatpush1.msra.mxu0 %v137
    %170 = vmatprep.subr.mxu0 %v141
    %171 = vmatpush1.msra.mxu0 %v140
    %172 = vmatprep.subr.mxu0 0.0
    %173 = vmatpush1.msra.mxu0 0.0
    %174 = vmatprep.subr.mxu0 0.0
    %175 = vmatpush1.msra.mxu0 0.0
    %176 = vmatprep.subr.mxu0 0.0
    %177 = vmatpush1.msra.mxu0 0.0
    %178 = vmatprep.subr.mxu0 0.0
    %179 = vmatpush1.msra.mxu0 0.0
    %180 = vmatprep.subr.mxu0 0.0
    %181 = vmatpush1.msra.mxu0 0.0
    %182 = vmatprep.subr.mxu0 0.0
    %183 = vmatpush1.msra.mxu0 0.0
    %184 = vmatprep.subr.mxu0 0.0
    %185 = vmatpush1.msra.mxu0 0.0
    %186 = vmatprep.subr.mxu0 0.0
    %187 = vmatpush1.msra.mxu0 0.0
    %188 = vmatprep.subr.mxu0 0.0
    %189 = vmatpush1.msra.mxu0 0.0
    %190 = vmatprep.subr.mxu0 0.0
    %191 = vmatpush1.msra.mxu0 0.0
    %192 = vmatprep.subr.mxu0 0.0
    %193 = vmatpush1.msra.mxu0 0.0
    %194 = vmatprep.subr.mxu0 0.0
    %195 = vmatpush1.msra.mxu0 0.0
    %196 = vmatprep.subr.mxu0 0.0
    %197 = vmatpush1.msra.mxu0 0.0
    %198 = vmatprep.subr.mxu0 0.0
    %199 = vmatpush1.msra.mxu0 0.0
    %200 = vmatprep.subr.mxu0 0.0
    %201 = vmatpush1.msra.mxu0 0.0
    %202 = vmatprep.subr.mxu0 0.0
    %203 = vmatpush1.msra.mxu0 0.0
    %204 = vmatprep.subr.mxu0 0.0
    %205 = vmatpush1.msra.mxu0 0.0
    %206 = vmatprep.subr.mxu0 0.0
    %207 = vmatpush1.msra.mxu0 0.0
    %208 = vmatprep.subr.mxu0 0.0
    %209 = vmatpush1.msra.mxu0 0.0
    %210 = vmatprep.subr.mxu0 0.0
    %211 = vmatpush1.msra.mxu0 0.0
    %212 = vmatprep.subr.mxu0 0.0
    %213 = vmatpush1.msra.mxu0 0.0
    %214 = vmatprep.subr.mxu0 0.0
    %215 = vmatpush1.msra.mxu0 0.0
    %216 = vmatprep.subr.mxu0 0.0
    %217 = vmatpush1.msra.mxu0 0.0
    %218 = vmatprep.subr.mxu0 0.0
    %219 = vmatpush1.msra.mxu0 0.0
    %220 = vmatprep.subr.mxu0 0.0
    %221 = vmatpush1.msra.mxu0 0.0
    %222 = vmatprep.subr.mxu0 0.0
    %223 = vmatpush1.msra.mxu0 0.0
    %224 = vmatprep.subr.mxu0 0.0
    %225 = vmatpush1.msra.mxu0 0.0
    %226 = vmatprep.subr.mxu0 0.0
    %227 = vmatpush1.msra.mxu0 0.0
    %228 = vmatprep.mubr.f32.mxu0 0.0
    %229 = vmatmul.mubr.f32.gmra.mrb[0].mxu0 %v162
    %v230 = vpop.f32.mrb[0].mxu0
    %v231 = vadd.f32 %v148, %v230
    %v232 = vpop.f32.mrb[0].mxu0
    %v233 = vadd.f32 %v152, %v232
    %234 = vdwg.mxu0
    %235 = vmatprep.subr.mxu0 0.0
    %236 = vmatpush1.msra.mxu0 %v133
    %237 = vmatprep.subr.mxu0 0.0
    %238 = vmatpush1.msra.mxu0 %v136
    %239 = vmatprep.subr.mxu0 0.0
    %240 = vmatpush1.msra.mxu0 %v139
    %241 = vmatprep.subr.mxu0 0.0
    %242 = vmatpush1.msra.mxu0 %v142
    %243 = vmatprep.subr.mxu0 0.0
    %244 = vmatpush1.msra.mxu0 0.0
    %245 = vmatprep.subr.mxu0 0.0
    %246 = vmatpush1.msra.mxu0 0.0
    %247 = vmatprep.subr.mxu0 0.0
    %248 = vmatpush1.msra.mxu0 0.0
    %249 = vmatprep.subr.mxu0 0.0
    %250 = vmatpush1.msra.mxu0 0.0
    %251 = vmatprep.subr.mxu0 0.0
    %252 = vmatpush1.msra.mxu0 0.0
    %253 = vmatprep.subr.mxu0 0.0
    %254 = vmatpush1.msra.mxu0 0.0
    %255 = vmatprep.subr.mxu0 0.0
    %256 = vmatpush1.msra.mxu0 0.0
    %257 = vmatprep.subr.mxu0 0.0
    %258 = vmatpush1.msra.mxu0 0.0
    %259 = vmatprep.subr.mxu0 0.0
    %260 = vmatpush1.msra.mxu0 0.0
    %261 = vmatprep.subr.mxu0 0.0
    %262 = vmatpush1.msra.mxu0 0.0
    %263 = vmatprep.subr.mxu0 0.0
    %264 = vmatpush1.msra.mxu0 0.0
    %265 = vmatprep.subr.mxu0 0.0
    %266 = vmatpush1.msra.mxu0 0.0
    %267 = vmatprep.subr.mxu0 0.0
    %268 = vmatpush1.msra.mxu0 0.0
    %269 = vmatprep.subr.mxu0 0.0
    %270 = vmatpush1.msra.mxu0 0.0
    %271 = vmatprep.subr.mxu0 0.0
    %272 = vmatpush1.msra.mxu0 0.0
    %273 = vmatprep.subr.mxu0 0.0
    %274 = vmatpush1.msra.mxu0 0.0
    %275 = vmatprep.subr.mxu0 0.0
    %276 = vmatpush1.msra.mxu0 0.0
    %277 = vmatprep.subr.mxu0 0.0
    %278 = vmatpush1.msra.mxu0 0.0
    %279 = vmatprep.subr.mxu0 0.0
    %280 = vmatpush1.msra.mxu0 0.0
    %281 = vmatprep.subr.mxu0 0.0
    %282 = vmatpush1.msra.mxu0 0.0
    %283 = vmatprep.subr.mxu0 0.0
    %284 = vmatpush1.msra.mxu0 0.0
    %285 = vmatprep.subr.mxu0 0.0
    %286 = vmatpush1.msra.mxu0 0.0
    %287 = vmatprep.subr.mxu0 0.0
    %288 = vmatpush1.msra.mxu0 0.0
    %289 = vmatprep.subr.mxu0 0.0
    %290 = vmatpush1.msra.mxu0 0.0
    %291 = vmatprep.subr.mxu0 0.0
    %292 = vmatpush1.msra.mxu0 0.0
    %293 = vmatprep.subr.mxu0 0.0
    %294 = vmatpush1.msra.mxu0 0.0
    %295 = vmatprep.subr.mxu0 0.0
    %296 = vmatpush1.msra.mxu0 0.0
    %297 = vmatprep.subr.mxu0 0.0
    %298 = vmatpush1.msra.mxu0 0.0
    %299 = vmatprep.mubr.f32.mxu0 0.0
    %300 = vmatmul.mubr.f32.gmra.mrb[0].mxu0 %v162
    %v301 = vpop.f32.mrb[0].mxu0
    %v302 = vadd.f32 %v156, %v301
    %v303 = vpop.f32.mrb[0].mxu0
    %304 = vdwg.mxu0
    %v305 = vmax.f32 %v231, 0.0
    %v306 = vmax.f32 %v233, 0.0
    %v307 = vmax.f32 %v302, 0.0
    %v308 = vld [vmem:[#allocation10] sm:$0xff]
    %v309 = vld [vmem:[#allocation10 + $0x8] sm:$0xff]
    %v310 = vld [vmem:[#allocation10 + $0x10] sm:$0xff]
    %v311 = vld [vmem:[#allocation10 + $0x18] sm:$0xff]
    %v312 = vld [vmem:[#allocation10 + $0x20] sm:$0xff]
    %v313 = vld [vmem:[#allocation10 + $0x28] sm:$0xff]
    %v314 = vld [vmem:[#allocation10 + $0x30] sm:$0xff]
    %v315 = vld [vmem:[#allocation10 + $0x38] sm:$0xff]
    %v316 = vld [vmem:[#allocation10 + $0x40] sm:$0xff]
    %v317 = vld [vmem:[#allocation10 + $0x48] sm:$0xff]
    %v318 = vld [vmem:[#allocation10 + $0x50] sm:$0xff]
    %v319 = vld [vmem:[#allocation10 + $0x58] sm:$0xff]
    %v320 = vld [vmem:[#allocation10 + $0x60] sm:$0xff]
    %v321 = vld [vmem:[#allocation10 + $0x68] sm:$0xff]
    %v322 = vld [vmem:[#allocation10 + $0x70] sm:$0xff]
    %v323 = vld [vmem:[#allocation10 + $0x78] sm:$0xff]
    %v324 = vld [vmem:[#allocation10 + $0x80] sm:$0xff]
    %v325 = vld [vmem:[#allocation10 + $0x88] sm:$0xff]
    %v326 = vld [vmem:[#allocation10 + $0x90] sm:$0xff]
    %v327 = vld [vmem:[#allocation10 + $0x98] sm:$0xff]
    %v328 = vld [vmem:[#allocation10 + $0xa0] sm:$0xff]
    %v329 = vld [vmem:[#allocation10 + $0xa8] sm:$0xff]
    %v330 = vld [vmem:[#allocation10 + $0xb0] sm:$0xff]
    %v331 = vld [vmem:[#allocation10 + $0xb8] sm:$0xff]
    %v332 = vld [vmem:[#allocation10 + $0xc0] sm:$0xff]
    %v333 = vld [vmem:[#allocation10 + $0xc8] sm:$0xff]
    %v334 = vld [vmem:[#allocation10 + $0xd0] sm:$0xff]
    %v335 = vld [vmem:[#allocation10 + $0xd8] sm:$0xff]
    %v336 = vld [vmem:[#allocation10 + $0xe0] sm:$0xff]
    %v337 = vld [vmem:[#allocation10 + $0xe8] sm:$0xff]
    %v338 = vld [vmem:[#allocation10 + $0xf0] sm:$0xff]
    %v339 = vld [vmem:[#allocation10 + $0xf8] sm:$0xff]
    %v340 = vld [vmem:[#allocation10 + $0x100] sm:$0xff]
    %v341 = vld [vmem:[#allocation10 + $0x108] sm:$0xff]
    %v342 = vld [vmem:[#allocation10 + $0x110] sm:$0xff]
    %v343 = vld [vmem:[#allocation10 + $0x118] sm:$0xff]
    %v344 = vld [vmem:[#allocation10 + $0x120] sm:$0xff]
    %v345 = vld [vmem:[#allocation10 + $0x128] sm:$0xf]
    %v346 = vld [vmem:[#allocation5] sm:$0x3]
    %v347 = vld [vmem:[#allocation8] sm:$0xff]
    %v348 = vld [vmem:[#allocation8 + $0x8] sm:$0xff]
    %v349 = vld [vmem:[#allocation8 + $0x10] sm:$0xff]
    %v350 = vld [vmem:[#allocation8 + $0x18] sm:$0xff]
    %v351 = vld [vmem:[#allocation8 + $0x20] sm:$0xff]
    %v352 = vld [vmem:[#allocation8 + $0x28] sm:$0xff]
    %v353 = vld [vmem:[%s5] sm:$0x7]
    %v355 = vlaneseq
    %v356 = vshrl.u32 %v355, 7
    %v357 = vsub.s32 0, %v356
    %v358 = vrot.slane %v353, %v357
    %v359 = vlaneseq
    %v360 = vshrl.u32 %v359, 7
    %v361 = vsub.s32 1, %v360
    %v362 = vrot.slane %v353, %v361
    %v363 = vlaneseq
    %v364 = vshrl.u32 %v363, 7
    %v365 = vsub.s32 2, %v364
    %v366 = vrot.slane %v353, %v365
    %vm370 = vcmask 130048
    %v372 = vsel %vm370, %v346, 0
    %374 = vmatprep.subr.mxu0 %v348
    %375 = vmatpush1.msra.mxu0 %v347
    %376 = vmatprep.subr.mxu0 %v351
    %377 = vmatpush1.msra.mxu0 %v350
    %378 = vmatprep.subr.mxu0 0.0
    %379 = vmatpush1.msra.mxu0 0.0
    %380 = vmatprep.subr.mxu0 0.0
    %381 = vmatpush1.msra.mxu0 0.0
    %382 = vmatprep.subr.mxu0 0.0
    %383 = vmatpush1.msra.mxu0 0.0
    %384 = vmatprep.subr.mxu0 0.0
    %385 = vmatpush1.msra.mxu0 0.0
    %386 = vmatprep.subr.mxu0 0.0
    %387 = vmatpush1.msra.mxu0 0.0
    %388 = vmatprep.subr.mxu0 0.0
    %389 = vmatpush1.msra.mxu0 0.0
    %390 = vmatprep.subr.mxu0 0.0
    %391 = vmatpush1.msra.mxu0 0.0
    %392 = vmatprep.subr.mxu0 0.0
    %393 = vmatpush1.msra.mxu0 0.0
    %394 = vmatprep.subr.mxu0 0.0
    %395 = vmatpush1.msra.mxu0 0.0
    %396 = vmatprep.subr.mxu0 0.0
    %397 = vmatpush1.msra.mxu0 0.0
    %398 = vmatprep.subr.mxu0 0.0
    %399 = vmatpush1.msra.mxu0 0.0
    %400 = vmatprep.subr.mxu0 0.0
    %401 = vmatpush1.msra.mxu0 0.0
    %402 = vmatprep.subr.mxu0 0.0
    %403 = vmatpush1.msra.mxu0 0.0
    %404 = vmatprep.subr.mxu0 0.0
    %405 = vmatpush1.msra.mxu0 0.0
    %406 = vmatprep.subr.mxu0 0.0
    %407 = vmatpush1.msra.mxu0 0.0
    %408 = vmatprep.subr.mxu0 0.0
    %409 = vmatpush1.msra.mxu0 0.0
    %410 = vmatprep.subr.mxu0 0.0
    %411 = vmatpush1.msra.mxu0 0.0
    %412 = vmatprep.subr.mxu0 0.0
    %413 = vmatpush1.msra.mxu0 0.0
    %414 = vmatprep.subr.mxu0 0.0
    %415 = vmatpush1.msra.mxu0 0.0
    %416 = vmatprep.subr.mxu0 0.0
    %417 = vmatpush1.msra.mxu0 0.0
    %418 = vmatprep.subr.mxu0 0.0
    %419 = vmatpush1.msra.mxu0 0.0
    %420 = vmatprep.subr.mxu0 0.0
    %421 = vmatpush1.msra.mxu0 0.0
    %422 = vmatprep.subr.mxu0 0.0
    %423 = vmatpush1.msra.mxu0 0.0
    %424 = vmatprep.subr.mxu0 0.0
    %425 = vmatpush1.msra.mxu0 0.0
    %426 = vmatprep.subr.mxu0 0.0
    %427 = vmatpush1.msra.mxu0 0.0
    %428 = vmatprep.subr.mxu0 0.0
    %429 = vmatpush1.msra.mxu0 0.0
    %430 = vmatprep.subr.mxu0 0.0
    %431 = vmatpush1.msra.mxu0 0.0
    %432 = vmatprep.subr.mxu0 0.0
    %433 = vmatpush1.msra.mxu0 0.0
    %434 = vmatprep.subr.mxu0 0.0
    %435 = vmatpush1.msra.mxu0 0.0
    %436 = vmatprep.subr.mxu0 0.0
    %437 = vmatpush1.msra.mxu0 0.0
    %438 = vmatprep.mubr.f32.mxu0 0.0
    %439 = vmatmul.mubr.f32.gmra.mrb[0].mxu0 %v372
    %v440 = vpop.f32.mrb[0].mxu0
    %v441 = vadd.f32 %v358, %v440
    %v442 = vpop.f32.mrb[0].mxu0
    %v443 = vadd.f32 %v362, %v442
    %444 = vdwg.mxu0
    %445 = vmatprep.subr.mxu0 0.0
    %446 = vmatpush1.msra.mxu0 %v349
    %447 = vmatprep.subr.mxu0 0.0
    %448 = vmatpush1.msra.mxu0 %v352
    %449 = vmatprep.subr.mxu0 0.0
    %450 = vmatpush1.msra.mxu0 0.0
    %451 = vmatprep.subr.mxu0 0.0
    %452 = vmatpush1.msra.mxu0 0.0
    %453 = vmatprep.subr.mxu0 0.0
    %454 = vmatpush1.msra.mxu0 0.0
    %455 = vmatprep.subr.mxu0 0.0
    %456 = vmatpush1.msra.mxu0 0.0
    %457 = vmatprep.subr.mxu0 0.0
    %458 = vmatpush1.msra.mxu0 0.0
    %459 = vmatprep.subr.mxu0 0.0
    %460 = vmatpush1.msra.mxu0 0.0
    %461 = vmatprep.subr.mxu0 0.0
    %462 = vmatpush1.msra.mxu0 0.0
    %463 = vmatprep.subr.mxu0 0.0
    %464 = vmatpush1.msra.mxu0 0.0
    %465 = vmatprep.subr.mxu0 0.0
    %466 = vmatpush1.msra.mxu0 0.0
    %467 = vmatprep.subr.mxu0 0.0
    %468 = vmatpush1.msra.mxu0 0.0
    %469 = vmatprep.subr.mxu0 0.0
    %470 = vmatpush1.msra.mxu0 0.0
    %471 = vmatprep.subr.mxu0 0.0
    %472 = vmatpush1.msra.mxu0 0.0
    %473 = vmatprep.subr.mxu0 0.0
    %474 = vmatpush1.msra.mxu0 0.0
    %475 = vmatprep.subr.mxu0 0.0
    %476 = vmatpush1.msra.mxu0 0.0
    %477 = vmatprep.subr.mxu0 0.0
    %478 = vmatpush1.msra.mxu0 0.0
    %479 = vmatprep.subr.mxu0 0.0
    %480 = vmatpush1.msra.mxu0 0.0
    %481 = vmatprep.subr.mxu0 0.0
    %482 = vmatpush1.msra.mxu0 0.0
    %483 = vmatprep.subr.mxu0 0.0
    %484 = vmatpush1.msra.mxu0 0.0
    %485 = vmatprep.subr.mxu0 0.0
    %486 = vmatpush1.msra.mxu0 0.0
    %487 = vmatprep.subr.mxu0 0.0
    %488 = vmatpush1.msra.mxu0 0.0
    %489 = vmatprep.subr.mxu0 0.0
    %490 = vmatpush1.msra.mxu0 0.0
    %491 = vmatprep.subr.mxu0 0.0
    %492 = vmatpush1.msra.mxu0 0.0
    %493 = vmatprep.subr.mxu0 0.0
    %494 = vmatpush1.msra.mxu0 0.0
    %495 = vmatprep.subr.mxu0 0.0
    %496 = vmatpush1.msra.mxu0 0.0
    %497 = vmatprep.subr.mxu0 0.0
    %498 = vmatpush1.msra.mxu0 0.0
    %499 = vmatprep.subr.mxu0 0.0
    %500 = vmatpush1.msra.mxu0 0.0
    %501 = vmatprep.subr.mxu0 0.0
    %502 = vmatpush1.msra.mxu0 0.0
    %503 = vmatprep.subr.mxu0 0.0
    %504 = vmatpush1.msra.mxu0 0.0
    %505 = vmatprep.subr.mxu0 0.0
    %506 = vmatpush1.msra.mxu0 0.0
    %507 = vmatprep.subr.mxu0 0.0
    %508 = vmatpush1.msra.mxu0 0.0
    %509 = vmatprep.mubr.f32.mxu0 0.0
    %510 = vmatmul.mubr.f32.gmra.mrb[0].mxu0 %v372
    %v511 = vpop.f32.mrb[0].mxu0
    %v512 = vadd.f32 %v366, %v511
    %v513 = vpop.f32.mrb[0].mxu0
    %514 = vdwg.mxu0
    %v515 = vmax.f32 %v441, 0.0
    %v516 = vmax.f32 %v443, 0.0
    %v517 = vmax.f32 %v512, 0.0
    %v518 = vld [vmem:[#allocation11] sm:$0xff]
    %v519 = vld [vmem:[#allocation11 + $0x8] sm:$0xff]
    %v520 = vld [vmem:[#allocation11 + $0x10] sm:$0xff]
    %v521 = vld [vmem:[#allocation11 + $0x18] sm:$0xff]
    %v522 = vld [vmem:[#allocation11 + $0x20] sm:$0xff]
    %v523 = vld [vmem:[#allocation11 + $0x28] sm:$0xff]
    %v524 = vld [vmem:[#allocation11 + $0x30] sm:$0xff]
    %v525 = vld [vmem:[#allocation11 + $0x38] sm:$0xff]
    %v526 = vld [vmem:[#allocation11 + $0x40] sm:$0xff]
    %v527 = vld [vmem:[#allocation11 + $0x48] sm:$0xff]
    %v528 = vld [vmem:[#allocation11 + $0x50] sm:$0xff]
    %v529 = vld [vmem:[#allocation11 + $0x58] sm:$0xff]
    %v530 = vld [vmem:[#allocation11 + $0x60] sm:$0xff]
    %v531 = vld [vmem:[#allocation11 + $0x68] sm:$0xff]
    %v532 = vld [vmem:[#allocation11 + $0x70] sm:$0xff]
    %v533 = vld [vmem:[#allocation11 + $0x78] sm:$0xff]
    %v534 = vld [vmem:[#allocation11 + $0x80] sm:$0xff]
    %v535 = vld [vmem:[#allocation11 + $0x88] sm:$0xff]
    %v536 = vld [vmem:[#allocation11 + $0x90] sm:$0xff]
    %v537 = vld [vmem:[#allocation11 + $0x98] sm:$0xff]
    %v538 = vld [vmem:[#allocation11 + $0xa0] sm:$0xff]
    %v539 = vld [vmem:[#allocation11 + $0xa8] sm:$0xff]
    %v540 = vld [vmem:[#allocation11 + $0xb0] sm:$0xff]
    %v541 = vld [vmem:[#allocation11 + $0xb8] sm:$0xff]
    %v542 = vld [vmem:[#allocation11 + $0xc0] sm:$0xff]
    %v543 = vld [vmem:[#allocation11 + $0xc8] sm:$0xff]
    %v544 = vld [vmem:[#allocation11 + $0xd0] sm:$0xff]
    %v545 = vld [vmem:[#allocation11 + $0xd8] sm:$0xff]
    %v546 = vld [vmem:[#allocation11 + $0xe0] sm:$0xff]
    %v547 = vld [vmem:[#allocation11 + $0xe8] sm:$0xff]
    %v548 = vld [vmem:[#allocation11 + $0xf0] sm:$0xff]
    %v549 = vld [vmem:[#allocation11 + $0xf8] sm:$0xff]
    %v550 = vld [vmem:[#allocation11 + $0x100] sm:$0xff]
    %v551 = vld [vmem:[#allocation11 + $0x108] sm:$0xff]
    %v552 = vld [vmem:[#allocation11 + $0x110] sm:$0xff]
    %v553 = vld [vmem:[#allocation11 + $0x118] sm:$0xff]
    %v554 = vld [vmem:[#allocation11 + $0x120] sm:$0xff]
    %v555 = vld [vmem:[#allocation11 + $0x128] sm:$0xf]
    %vm556 = vcmask 359424
    %v558 = vsel %vm556, %v517, 0
    %vm560 = vcmask 1043456
    %v562 = vsel %vm560, %v555, 0
    %564 = vmatprep.subr.mxu0 0.0
    %565 = vmatpush1.msra.mxu0 %v518
    %566 = vmatprep.subr.mxu0 0.0
    %567 = vmatpush1.msra.mxu0 %v519
    %568 = vmatprep.subr.mxu0 0.0
    %569 = vmatpush1.msra.mxu0 %v520
    %570 = vmatprep.subr.mxu0 0.0
    %571 = vmatpush1.msra.mxu0 %v521
    %572 = vmatprep.subr.mxu0 0.0
    %573 = vmatpush1.msra.mxu0 %v522
    %574 = vmatprep.subr.mxu0 0.0
    %575 = vmatpush1.msra.mxu0 %v523
    %576 = vmatprep.subr.mxu0 0.0
    %577 = vmatpush1.msra.mxu0 %v524
    %578 = vmatprep.subr.mxu0 0.0
    %579 = vmatpush1.msra.mxu0 %v525
    %580 = vmatprep.subr.mxu0 0.0
    %581 = vmatpush1.msra.mxu0 %v526
    %582 = vmatprep.subr.mxu0 0.0
    %583 = vmatpush1.msra.mxu0 %v527
    %584 = vmatprep.subr.mxu0 0.0
    %585 = vmatpush1.msra.mxu0 %v528
    %586 = vmatprep.subr.mxu0 0.0
    %587 = vmatpush1.msra.mxu0 %v529
    %588 = vmatprep.subr.mxu0 0.0
    %589 = vmatpush1.msra.mxu0 %v530
    %590 = vmatprep.subr.mxu0 0.0
    %591 = vmatpush1.msra.mxu0 %v531
    %592 = vmatprep.subr.mxu0 0.0
    %593 = vmatpush1.msra.mxu0 %v532
    %594 = vmatprep.subr.mxu0 0.0
    %595 = vmatpush1.msra.mxu0 %v533
    %596 = vmatprep.subr.mxu0 0.0
    %597 = vmatpush1.msra.mxu0 %v534
    %598 = vmatprep.subr.mxu0 0.0
    %599 = vmatpush1.msra.mxu0 %v535
    %600 = vmatprep.subr.mxu0 0.0
    %601 = vmatpush1.msra.mxu0 %v536
    %602 = vmatprep.subr.mxu0 0.0
    %603 = vmatpush1.msra.mxu0 %v537
    %604 = vmatprep.subr.mxu0 0.0
    %605 = vmatpush1.msra.mxu0 %v538
    %606 = vmatprep.subr.mxu0 0.0
    %607 = vmatpush1.msra.mxu0 %v539
    %608 = vmatprep.subr.mxu0 0.0
    %609 = vmatpush1.msra.mxu0 %v540
    %610 = vmatprep.subr.mxu0 0.0
    %611 = vmatpush1.msra.mxu0 %v541
    %612 = vmatprep.subr.mxu0 0.0
    %613 = vmatpush1.msra.mxu0 %v542
    %614 = vmatprep.subr.mxu0 0.0
    %615 = vmatpush1.msra.mxu0 %v543
    %616 = vmatprep.subr.mxu0 0.0
    %617 = vmatpush1.msra.mxu0 %v544
    %618 = vmatprep.subr.mxu0 0.0
    %619 = vmatpush1.msra.mxu0 %v545
    %620 = vmatprep.subr.mxu0 0.0
    %621 = vmatpush1.msra.mxu0 %v546
    %622 = vmatprep.subr.mxu0 0.0
    %623 = vmatpush1.msra.mxu0 %v547
    %624 = vmatprep.subr.mxu0 0.0
    %625 = vmatpush1.msra.mxu0 %v548
    %626 = vmatprep.subr.mxu0 0.0
    %627 = vmatpush1.msra.mxu0 %v549
    %628 = vmatprep.mubr.f32.mxu0 %v516
    %629 = vmatmul.mubr.f32.gmra.mrb[0].mxu0 %v515
    %v630 = vpop.f32.mrb[0].mxu0
    %v631 = vadd.f32 0.0, %v630
    %v632 = vpop.f32.mrb[0].mxu0
    %633 = vdwg.mxu0
    %634 = vmatprep.subr.mxu0 0.0
    %635 = vmatpush1.msra.mxu0 %v550
    %636 = vmatprep.subr.mxu0 0.0
    %637 = vmatpush1.msra.mxu0 %v551
    %638 = vmatprep.subr.mxu0 0.0
    %639 = vmatpush1.msra.mxu0 %v552
    %640 = vmatprep.subr.mxu0 0.0
    %641 = vmatpush1.msra.mxu0 %v553
    %642 = vmatprep.subr.mxu0 0.0
    %643 = vmatpush1.msra.mxu0 %v554
    %644 = vmatprep.subr.mxu0 0.0
    %645 = vmatpush1.msra.mxu0 %v562
    %646 = vmatprep.subr.mxu0 0.0
    %647 = vmatpush1.msra.mxu0 0.0
    %648 = vmatprep.subr.mxu0 0.0
    %649 = vmatpush1.msra.mxu0 0.0
    %650 = vmatprep.subr.mxu0 0.0
    %651 = vmatpush1.msra.mxu0 0.0
    %652 = vmatprep.subr.mxu0 0.0
    %653 = vmatpush1.msra.mxu0 0.0
    %654 = vmatprep.subr.mxu0 0.0
    %655 = vmatpush1.msra.mxu0 0.0
    %656 = vmatprep.subr.mxu0 0.0
    %657 = vmatpush1.msra.mxu0 0.0
    %658 = vmatprep.subr.mxu0 0.0
    %659 = vmatpush1.msra.mxu0 0.0
    %660 = vmatprep.subr.mxu0 0.0
    %661 = vmatpush1.msra.mxu0 0.0
    %662 = vmatprep.subr.mxu0 0.0
    %663 = vmatpush1.msra.mxu0 0.0
    %664 = vmatprep.subr.mxu0 0.0
    %665 = vmatpush1.msra.mxu0 0.0
    %666 = vmatprep.subr.mxu0 0.0
    %667 = vmatpush1.msra.mxu0 0.0
    %668 = vmatprep.subr.mxu0 0.0
    %669 = vmatpush1.msra.mxu0 0.0
    %670 = vmatprep.subr.mxu0 0.0
    %671 = vmatpush1.msra.mxu0 0.0
    %672 = vmatprep.subr.mxu0 0.0
    %673 = vmatpush1.msra.mxu0 0.0
    %674 = vmatprep.subr.mxu0 0.0
    %675 = vmatpush1.msra.mxu0 0.0
    %676 = vmatprep.subr.mxu0 0.0
    %677 = vmatpush1.msra.mxu0 0.0
    %678 = vmatprep.subr.mxu0 0.0
    %679 = vmatpush1.msra.mxu0 0.0
    %680 = vmatprep.subr.mxu0 0.0
    %681 = vmatpush1.msra.mxu0 0.0
    %682 = vmatprep.subr.mxu0 0.0
    %683 = vmatpush1.msra.mxu0 0.0
    %684 = vmatprep.subr.mxu0 0.0
    %685 = vmatpush1.msra.mxu0 0.0
    %686 = vmatprep.subr.mxu0 0.0
    %687 = vmatpush1.msra.mxu0 0.0
    %688 = vmatprep.subr.mxu0 0.0
    %689 = vmatpush1.msra.mxu0 0.0
    %690 = vmatprep.subr.mxu0 0.0
    %691 = vmatpush1.msra.mxu0 0.0
    %692 = vmatprep.subr.mxu0 0.0
    %693 = vmatpush1.msra.mxu0 0.0
    %694 = vmatprep.subr.mxu0 0.0
    %695 = vmatpush1.msra.mxu0 0.0
    %696 = vmatprep.subr.mxu0 0.0
    %697 = vmatpush1.msra.mxu0 0.0
    %698 = vmatprep.mubr.f32.mxu0 0.0
    %699 = vmatmul.mubr.f32.gmra.mrb[0].mxu0 %v558
    %v700 = vpop.f32.mrb[0].mxu0
    %v701 = vadd.f32 %v631, %v700
    %v702 = vpop.f32.mrb[0].mxu0
    %703 = vdwg.mxu0
    %v705 = vsel %vm556, %v307, 0
    %v708 = vsel %vm560, %v345, 0
    %710 = vmatprep.subr.mxu0 0.0
    %711 = vmatpush1.msra.mxu0 %v308
    %712 = vmatprep.subr.mxu0 0.0
    %713 = vmatpush1.msra.mxu0 %v309
    %714 = vmatprep.subr.mxu0 0.0
    %715 = vmatpush1.msra.mxu0 %v310
    %716 = vmatprep.subr.mxu0 0.0
    %717 = vmatpush1.msra.mxu0 %v311
    %718 = vmatprep.subr.mxu0 0.0
    %719 = vmatpush1.msra.mxu0 %v312
    %720 = vmatprep.subr.mxu0 0.0
    %721 = vmatpush1.msra.mxu0 %v313
    %722 = vmatprep.subr.mxu0 0.0
    %723 = vmatpush1.msra.mxu0 %v314
    %724 = vmatprep.subr.mxu0 0.0
    %725 = vmatpush1.msra.mxu0 %v315
    %726 = vmatprep.subr.mxu0 0.0
    %727 = vmatpush1.msra.mxu0 %v316
    %728 = vmatprep.subr.mxu0 0.0
    %729 = vmatpush1.msra.mxu0 %v317
    %730 = vmatprep.subr.mxu0 0.0
    %731 = vmatpush1.msra.mxu0 %v318
    %732 = vmatprep.subr.mxu0 0.0
    %733 = vmatpush1.msra.mxu0 %v319
    %734 = vmatprep.subr.mxu0 0.0
    %735 = vmatpush1.msra.mxu0 %v320
    %736 = vmatprep.subr.mxu0 0.0
    %737 = vmatpush1.msra.mxu0 %v321
    %738 = vmatprep.subr.mxu0 0.0
    %739 = vmatpush1.msra.mxu0 %v322
    %740 = vmatprep.subr.mxu0 0.0
    %741 = vmatpush1.msra.mxu0 %v323
    %742 = vmatprep.subr.mxu0 0.0
    %743 = vmatpush1.msra.mxu0 %v324
    %744 = vmatprep.subr.mxu0 0.0
    %745 = vmatpush1.msra.mxu0 %v325
    %746 = vmatprep.subr.mxu0 0.0
    %747 = vmatpush1.msra.mxu0 %v326
    %748 = vmatprep.subr.mxu0 0.0
    %749 = vmatpush1.msra.mxu0 %v327
    %750 = vmatprep.subr.mxu0 0.0
    %751 = vmatpush1.msra.mxu0 %v328
    %752 = vmatprep.subr.mxu0 0.0
    %753 = vmatpush1.msra.mxu0 %v329
    %754 = vmatprep.subr.mxu0 0.0
    %755 = vmatpush1.msra.mxu0 %v330
    %756 = vmatprep.subr.mxu0 0.0
    %757 = vmatpush1.msra.mxu0 %v331
    %758 = vmatprep.subr.mxu0 0.0
    %759 = vmatpush1.msra.mxu0 %v332
    %760 = vmatprep.subr.mxu0 0.0
    %761 = vmatpush1.msra.mxu0 %v333
    %762 = vmatprep.subr.mxu0 0.0
    %763 = vmatpush1.msra.mxu0 %v334
    %764 = vmatprep.subr.mxu0 0.0
    %765 = vmatpush1.msra.mxu0 %v335
    %766 = vmatprep.subr.mxu0 0.0
    %767 = vmatpush1.msra.mxu0 %v336
    %768 = vmatprep.subr.mxu0 0.0
    %769 = vmatpush1.msra.mxu0 %v337
    %770 = vmatprep.subr.mxu0 0.0
    %771 = vmatpush1.msra.mxu0 %v338
    %772 = vmatprep.subr.mxu0 0.0
    %773 = vmatpush1.msra.mxu0 %v339
    %774 = vmatprep.mubr.f32.mxu0 %v306
    %775 = vmatmul.mubr.f32.gmra.mrb[0].mxu0 %v305
    %v776 = vpop.f32.mrb[0].mxu0
    %v777 = vadd.f32 %v701, %v776
    %v778 = vpop.f32.mrb[0].mxu0
    %779 = vdwg.mxu0
    %780 = vmatprep.subr.mxu0 0.0
    %781 = vmatpush1.msra.mxu0 %v340
    %782 = vmatprep.subr.mxu0 0.0
    %783 = vmatpush1.msra.mxu0 %v341
    %784 = vmatprep.subr.mxu0 0.0
    %785 = vmatpush1.msra.mxu0 %v342
    %786 = vmatprep.subr.mxu0 0.0
    %787 = vmatpush1.msra.mxu0 %v343
    %788 = vmatprep.subr.mxu0 0.0
    %789 = vmatpush1.msra.mxu0 %v344
    %790 = vmatprep.subr.mxu0 0.0
    %791 = vmatpush1.msra.mxu0 %v708
    %792 = vmatprep.subr.mxu0 0.0
    %793 = vmatpush1.msra.mxu0 0.0
    %794 = vmatprep.subr.mxu0 0.0
    %795 = vmatpush1.msra.mxu0 0.0
    %796 = vmatprep.subr.mxu0 0.0
    %797 = vmatpush1.msra.mxu0 0.0
    %798 = vmatprep.subr.mxu0 0.0
    %799 = vmatpush1.msra.mxu0 0.0
    %800 = vmatprep.subr.mxu0 0.0
    %801 = vmatpush1.msra.mxu0 0.0
    %802 = vmatprep.subr.mxu0 0.0
    %803 = vmatpush1.msra.mxu0 0.0
    %804 = vmatprep.subr.mxu0 0.0
    %805 = vmatpush1.msra.mxu0 0.0
    %806 = vmatprep.subr.mxu0 0.0
    %807 = vmatpush1.msra.mxu0 0.0
    %808 = vmatprep.subr.mxu0 0.0
    %809 = vmatpush1.msra.mxu0 0.0
    %810 = vmatprep.subr.mxu0 0.0
    %811 = vmatpush1.msra.mxu0 0.0
    %812 = vmatprep.subr.mxu0 0.0
    %813 = vmatpush1.msra.mxu0 0.0
    %814 = vmatprep.subr.mxu0 0.0
    %815 = vmatpush1.msra.mxu0 0.0
    %816 = vmatprep.subr.mxu0 0.0
    %817 = vmatpush1.msra.mxu0 0.0
    %818 = vmatprep.subr.mxu0 0.0
    %819 = vmatpush1.msra.mxu0 0.0
    %820 = vmatprep.subr.mxu0 0.0
    %821 = vmatpush1.msra.mxu0 0.0
    %822 = vmatprep.subr.mxu0 0.0
    %823 = vmatpush1.msra.mxu0 0.0
    %824 = vmatprep.subr.mxu0 0.0
    %825 = vmatpush1.msra.mxu0 0.0
    %826 = vmatprep.subr.mxu0 0.0
    %827 = vmatpush1.msra.mxu0 0.0
    %828 = vmatprep.subr.mxu0 0.0
    %829 = vmatpush1.msra.mxu0 0.0
    %830 = vmatprep.subr.mxu0 0.0
    %831 = vmatpush1.msra.mxu0 0.0
    %832 = vmatprep.subr.mxu0 0.0
    %833 = vmatpush1.msra.mxu0 0.0
    %834 = vmatprep.subr.mxu0 0.0
    %835 = vmatpush1.msra.mxu0 0.0
    %836 = vmatprep.subr.mxu0 0.0
    %837 = vmatpush1.msra.mxu0 0.0
    %838 = vmatprep.subr.mxu0 0.0
    %839 = vmatpush1.msra.mxu0 0.0
    %840 = vmatprep.subr.mxu0 0.0
    %841 = vmatpush1.msra.mxu0 0.0
    %842 = vmatprep.subr.mxu0 0.0
    %843 = vmatpush1.msra.mxu0 0.0
    %844 = vmatprep.mubr.f32.mxu0 0.0
    %845 = vmatmul.mubr.f32.gmra.mrb[0].mxu0 %v705
    %v846 = vpop.f32.mrb[0].mxu0
    %v847 = vadd.f32 %v777, %v846
    %v848 = vpop.f32.mrb[0].mxu0
    %849 = vdwg.mxu0
    %v850 = vld [vmem:[%s8] sm:$0x1]
    %v852 = vlaneseq
    %v853 = vshrl.u32 %v852, 7
    %v854 = vsub.s32 0, %v853
    %v855 = vrot.slane %v850, %v854
    %v857 = vadd.f32 %v847, %v855
    %v858 = vmax.f32 %v857, 0.0
    %v859 = vld [vmem:[#allocation13] sm:$0xff]
    %v860 = vld [vmem:[#allocation13 + $0x8] sm:$0xff]
    %v861 = vld [vmem:[#allocation13 + $0x10] sm:$0xff]
    %v862 = vld [vmem:[#allocation13 + $0x18] sm:$0xff]
    %v863 = vld [vmem:[#allocation13 + $0x20] sm:$0xff]
    %v864 = vld [vmem:[#allocation13 + $0x28] sm:$0xff]
    %v865 = vld [vmem:[#allocation13 + $0x30] sm:$0xff]
    %v866 = vld [vmem:[#allocation13 + $0x38] sm:$0xff]
    %v867 = vld [vmem:[#allocation13 + $0x40] sm:$0xff]
    %v868 = vld [vmem:[#allocation13 + $0x48] sm:$0xff]
    %v869 = vld [vmem:[#allocation13 + $0x50] sm:$0xff]
    %v870 = vld [vmem:[#allocation13 + $0x58] sm:$0xff]
    %v871 = vld [vmem:[#allocation13 + $0x60] sm:$0xff]
    %v872 = vld [vmem:[#allocation13 + $0x68] sm:$0xff]
    %v873 = vld [vmem:[#allocation13 + $0x70] sm:$0xff]
    %v874 = vld [vmem:[#allocation13 + $0x78] sm:$0xff]
    %v875 = vld [vmem:[%s10] sm:$0x1]
    %v877 = vlaneseq
    %v878 = vshrl.u32 %v877, 7
    %v879 = vsub.s32 0, %v878
    %v880 = vrot.slane %v875, %v879
    %882 = vmatprep.subr.mxu0 0.0
    %883 = vmatpush1.msra.mxu0 %v859
    %884 = vmatprep.subr.mxu0 0.0
    %885 = vmatpush1.msra.mxu0 %v860
    %886 = vmatprep.subr.mxu0 0.0
    %887 = vmatpush1.msra.mxu0 %v861
    %888 = vmatprep.subr.mxu0 0.0
    %889 = vmatpush1.msra.mxu0 %v862
    %890 = vmatprep.subr.mxu0 0.0
    %891 = vmatpush1.msra.mxu0 %v863
    %892 = vmatprep.subr.mxu0 0.0
    %893 = vmatpush1.msra.mxu0 %v864
    %894 = vmatprep.subr.mxu0 0.0
    %895 = vmatpush1.msra.mxu0 %v865
    %896 = vmatprep.subr.mxu0 0.0
    %897 = vmatpush1.msra.mxu0 %v866
    %898 = vmatprep.subr.mxu0 0.0
    %899 = vmatpush1.msra.mxu0 %v867
    %900 = vmatprep.subr.mxu0 0.0
    %901 = vmatpush1.msra.mxu0 %v868
    %902 = vmatprep.subr.mxu0 0.0
    %903 = vmatpush1.msra.mxu0 %v869
    %904 = vmatprep.subr.mxu0 0.0
    %905 = vmatpush1.msra.mxu0 %v870
    %906 = vmatprep.subr.mxu0 0.0
    %907 = vmatpush1.msra.mxu0 %v871
    %908 = vmatprep.subr.mxu0 0.0
    %909 = vmatpush1.msra.mxu0 %v872
    %910 = vmatprep.subr.mxu0 0.0
    %911 = vmatpush1.msra.mxu0 %v873
    %912 = vmatprep.subr.mxu0 0.0
    %913 = vmatpush1.msra.mxu0 %v874
    %914 = vmatprep.subr.mxu0 0.0
    %915 = vmatpush1.msra.mxu0 0.0
    %916 = vmatprep.subr.mxu0 0.0
    %917 = vmatpush1.msra.mxu0 0.0
    %918 = vmatprep.subr.mxu0 0.0
    %919 = vmatpush1.msra.mxu0 0.0
    %920 = vmatprep.subr.mxu0 0.0
    %921 = vmatpush1.msra.mxu0 0.0
    %922 = vmatprep.subr.mxu0 0.0
    %923 = vmatpush1.msra.mxu0 0.0
    %924 = vmatprep.subr.mxu0 0.0
    %925 = vmatpush1.msra.mxu0 0.0
    %926 = vmatprep.subr.mxu0 0.0
    %927 = vmatpush1.msra.mxu0 0.0
    %928 = vmatprep.subr.mxu0 0.0
    %929 = vmatpush1.msra.mxu0 0.0
    %930 = vmatprep.subr.mxu0 0.0
    %931 = vmatpush1.msra.mxu0 0.0
    %932 = vmatprep.subr.mxu0 0.0
    %933 = vmatpush1.msra.mxu0 0.0
    %934 = vmatprep.subr.mxu0 0.0
    %935 = vmatpush1.msra.mxu0 0.0
    %936 = vmatprep.subr.mxu0 0.0
    %937 = vmatpush1.msra.mxu0 0.0
    %938 = vmatprep.subr.mxu0 0.0
    %939 = vmatpush1.msra.mxu0 0.0
    %940 = vmatprep.subr.mxu0 0.0
    %941 = vmatpush1.msra.mxu0 0.0
    %942 = vmatprep.subr.mxu0 0.0
    %943 = vmatpush1.msra.mxu0 0.0
    %944 = vmatprep.subr.mxu0 0.0
    %945 = vmatpush1.msra.mxu0 0.0
    %946 = vmatprep.mubr.f32.mxu0 0.0
    %947 = vmatmul.mubr.f32.gmra.mrb[0].mxu0 %v858
    %v948 = vpop.f32.mrb[0].mxu0
    %v949 = vadd.f32 %v880, %v948
    %v950 = vpop.f32.mrb[0].mxu0
    %951 = vdwg.mxu0
    %952 = vst [vmem:[#allocation14] sm:$0x3] %v949
    // Predicated region
    $region74: #{tpu_custom_call.1} parent=1 // pred_check
      _
    $region75: #{tpu_custom_call.1} parent=1 // pred_check_branch
      %954 = sbr.rel (0) target = $region77
    $region76: #{tpu_custom_call.1} parent=1 // pred_region
      %s956 = ssub.s32 32, 32
      %957 = vsyncadd [#allocation4], %s956
      %s959 = sshll.u32 [#allocation14], 4
      %s960 = int_to_ptr.vmem [resolvable:$true] %s959
      %962 = dma.vmem_to_hbm [thread:$0]  %s960, 32, %s11, [#allocation4]
    $region77: #{tpu_custom_call.1} parent=1 // pred_fallthru
      _
    // Predicated region
    $region78: #{tpu_custom_call.1} parent=1 // pred_check
      _
    $region79: #{tpu_custom_call.1} parent=1 // pred_check_branch
      %964 = sbr.rel (0) target = $region81
    $region80: #{tpu_custom_call.1} parent=1 // pred_region
      %965 = dma.done [#allocation4], 32
    $region81: #{tpu_custom_call.1} parent=1 // pred_fallthru
      _
    %966 = vsyncpa [#allocation3], 1
    %967 = vsyncpa [#allocation6], 1
    %968 = vsyncpa [#allocation9], 1
    %969 = vsyncpa [#allocation12], 1
    %970 = vsyncpa [#allocation4], 1

</llo_original>
